<compile_context>
chip_gen: v7x
topology: tpu7x:2x2x1
jax: 0.10.0
libtpu: 0.0.40
codegen_flags: <defaults>
</compile_context>

<pallas_src>
import jax
import jax.numpy as jnp
from jax.experimental import pallas as pl
from jax.experimental.pallas import tpu as pltpu


def _cdiv(a, b):
    return -(-a // b)


def _round_up(a, m):
    return _cdiv(a, m) * m


def risk_kernel(scal_ref, f1_ref, f2_ref, other_ref, w1_ref, b1_ref, w2a_ref, out_ref):
    # scalar table (SMEM, scalar-prefetched)
    t1_lo = scal_ref[0]
    t1_hi = scal_ref[1]
    t2_lo = scal_ref[2]
    t2_hi = scal_ref[3]
    w2b_sum = scal_ref[4]
    b2 = scal_ref[5]

    # ThresholdLayer -- batch on sublanes, so these are (tb, 1) columns.
    f1 = f1_ref[...]
    f2 = f2_ref[...]
    within = (f1 >= t1_lo) & (f1 <= t1_hi) & (f2 >= t2_lo) & (f2 <= t2_hi)
    risk = 1.0 - within.astype(jnp.float32)                       # (tb, 1)

    # fc1 + ReLU in natural layout: (tb, D) @ (D, H) -> (tb, H) on the MXU.
    x = jnp.dot(other_ref[...], w1_ref[...], preferred_element_type=jnp.float32)
    x = jnp.maximum(x + b1_ref[...], 0.0)                         # (tb, H)

    # fc2:
    #  * x-half: VPU multiply + lane reduce (MXU/VALU/XLU all have slack in a
    #    DMA-bound kernel, so this is free)
    #  * risk-half: risk_expanded @ w2b == risk * sum(w2b)  (exact collapse;
    #    the single risk scalar is broadcast across all H concat columns)
    xpart = jnp.sum(x * w2a_ref[...], axis=1, keepdims=True)      # (tb, 1)
    logits = xpart + risk * w2b_sum + b2                          # (tb, 1)

    out_ref[...] = jax.nn.sigmoid(logits)


def risk_classification_forward(feature1, feature2, other_features, params, *, tb=8192):
    """feature1/feature2: (B,), other_features: (B, D). Returns (B, 1) f32."""
    B, D = other_features.shape
    H = params["w1"].shape[1]

    # ---- batch-tile selection -------------------------------------------
    # Big tiles amortize per-grid-step overhead; keep the grid even and >= 2
    # when the batch is large enough so both v7x TensorCores get work.
    ng = max(1, _cdiv(B, tb))
    if B >= 1024 and ng < 2:
        ng = 2
    if ng > 1 and ng % 2:
        ng += 1
    tb_eff = _round_up(_cdiv(B, ng), 8)        # sublane-aligned tile
    ng = _cdiv(B, tb_eff)

    # ---- zero-copy input prep (no transpose / pad / re-layout passes) ----
    f1 = feature1.astype(jnp.float32).reshape(B, 1)
    f2 = feature2.astype(jnp.float32).reshape(B, 1)
    other = other_features.astype(jnp.float32)                    # no-op if already f32

    w1 = params["w1"].astype(jnp.float32)                         # (D, H)
    b1 = params["b1"].astype(jnp.float32)                         # (1, H)
    w2a = params["w2a"].astype(jnp.float32)                       # (1, H)

    scalars = jnp.array(
        [params["t1_lo"], params["t1_hi"], params["t2_lo"], params["t2_hi"],
         params["w2b_sum"], params["b2"], 0.0, 0.0],
        dtype=jnp.float32)                                        # (8,) -> SMEM

    grid_spec = pltpu.PrefetchScalarGridSpec(
        num_scalar_prefetch=1,
        grid=(ng,),
        in_specs=[
            pl.BlockSpec((tb_eff, 1), lambda i, s: (i, 0)),       # feature1 (batch tiled)
            pl.BlockSpec((tb_eff, 1), lambda i, s: (i, 0)),       # feature2 (batch tiled)
            pl.BlockSpec((tb_eff, D), lambda i, s: (i, 0)),       # other    (contiguous DMA)
            pl.BlockSpec((D, H), lambda i, s: (0, 0)),            # w1   (VMEM-resident)
            pl.BlockSpec((1, H), lambda i, s: (0, 0)),            # b1   (VMEM-resident)
            pl.BlockSpec((1, H), lambda i, s: (0, 0)),            # w2a  (VMEM-resident)
        ],
        out_specs=pl.BlockSpec((tb_eff, 1), lambda i, s: (i, 0)), # (B, 1) output, no slice
    )

    out = pl.pallas_call(
        risk_kernel,
        out_shape=jax.ShapeDtypeStruct((B, 1), jnp.float32),
        grid_spec=grid_spec,
        compiler_params=pltpu.CompilerParams(
            dimension_semantics=("parallel",),     # shard batch tiles over v7x TCs
            vmem_limit_bytes=32 * 1024 * 1024,     # ~300 B/row per step -> tb up to ~64k
        ),
    )(scalars, f1, f2, other, w1, b1, w2a)

    return out


def init_params(key, other_features_dim, hidden_dim):
    k1, k2, k3, k4 = jax.random.split(key, 4)
    D, H = other_features_dim, hidden_dim
    # PyTorch nn.Linear stores weight as (out, in).
    w1_pt = jax.random.normal(k1, (H, D), jnp.float32) * 0.1       # fc1.weight
    b1_pt = jax.random.normal(k2, (H,), jnp.float32) * 0.1         # fc1.bias
    w2_pt = jax.random.normal(k3, (1, 2 * H), jnp.float32) * 0.1   # fc2.weight
    b2_pt = jax.random.normal(k4, (1,), jnp.float32) * 0.1         # fc2.bias
    return {
        # kernel layout (one-time conversion, done outside the hot path)
        "w1": w1_pt.T,                        # (D, H): natural-layout MXU operand
        "b1": b1_pt.reshape(1, H),            # (1, H)
        "w2a": w2_pt[0, :H].reshape(1, H),    # (1, H): fc2 half acting on x
        "w2b_sum": jnp.sum(w2_pt[0, H:]),     # scalar: risk_expanded @ w2b == risk*sum(w2b)
        "b2": b2_pt[0],                       # scalar
        # ThresholdLayer init: low=0.0, high=1.0 for both features
        "t1_lo": 0.0, "t1_hi": 1.0, "t2_lo": 0.0, "t2_hi": 1.0,
        # PyTorch-layout copies kept only for the reference check
        "w1_pt": w1_pt, "b1_pt": b1_pt, "w2_pt": w2_pt, "b2_pt": b2_pt,
    }


if __name__ == "__main__":
    B, D, H = 8, 16, 32
    key = jax.random.PRNGKey(0)
    kf1, kf2, kx, kp = jax.random.split(key, 4)

    # features spread around [0, 1] so some rows fall outside the thresholds
    feature1 = jax.random.uniform(kf1, (B,), jnp.float32, minval=-0.5, maxval=1.5)
    feature2 = jax.random.uniform(kf2, (B,), jnp.float32, minval=-0.5, maxval=1.5)
    other_features = jax.random.normal(kx, (B, D), jnp.float32)

    params = init_params(kp, D, H)

    out = risk_classification_forward(feature1, feature2, other_features, params)
    out = jax.block_until_ready(out)

    # pure-JAX reference of the exact PyTorch forward (full concat form, f32)
    within = ((feature1 >= params["t1_lo"]) & (feature1 <= params["t1_hi"])
              & (feature2 >= params["t2_lo"]) & (feature2 <= params["t2_hi"]))
    risk = (1.0 - within.astype(jnp.float32)).reshape(B, 1)
    x_ref = jnp.maximum(other_features @ params["w1_pt"].T + params["b1_pt"][None, :], 0.0)
    combined = jnp.concatenate([x_ref, jnp.broadcast_to(risk, (B, H))], axis=1)
    logits_ref = combined @ params["w2_pt"].T + params["b2_pt"][None, :]
    ref = jax.nn.sigmoid(logits_ref)

    assert out.shape == (B, 1)
    assert jnp.allclose(out, ref, atol=2e-3, rtol=2e-3), (out, ref)
    print("KERNEL_OK")
</pallas_src>

<mosaic_0001>
module attributes {stable_mosaic.version = 11 : i64} {
  func.func @risk_kernel(%arg0: i32, %arg1: memref<8xf32, #tpu.memory_space<smem>>, %arg2: memref<8x1xf32, #tpu.memory_space<vmem>>, %arg3: memref<8x1xf32, #tpu.memory_space<vmem>>, %arg4: memref<8x16xf32, #tpu.memory_space<vmem>>, %arg5: memref<16x32xf32, #tpu.memory_space<vmem>>, %arg6: memref<1x32xf32, #tpu.memory_space<vmem>>, %arg7: memref<1x32xf32, #tpu.memory_space<vmem>>, %arg8: memref<8x1xf32, #tpu.memory_space<vmem>>) attributes {dimension_semantics = [#tpu.dimension_semantics<parallel>], iteration_bounds = array<i64: 1>, scalar_prefetch = 1 : i64, scratch_operands = 0 : i64, tpu.core_type = #tpu.core_type<tc>, window_params = [{transform_indices = @transform_0, window_bounds = array<i64: 8, 1>}, {transform_indices = @transform_1, window_bounds = array<i64: 8, 1>}, {transform_indices = @transform_2, window_bounds = array<i64: 8, 16>}, {pipeline_mode = #tpu.pipeline_mode<synchronous>, transform_indices = @transform_3, window_bounds = array<i64: 16, 32>}, {pipeline_mode = #tpu.pipeline_mode<synchronous>, transform_indices = @transform_4, window_bounds = array<i64: 1, 32>}, {pipeline_mode = #tpu.pipeline_mode<synchronous>, transform_indices = @transform_5, window_bounds = array<i64: 1, 32>}, {transform_indices = @transform_6, window_bounds = array<i64: 8, 1>}]} {
    %c0 = arith.constant 0 : index
    %0 = memref.load %arg1[%c0] : memref<8xf32, #tpu.memory_space<smem>>
    %c1 = arith.constant 1 : index
    %1 = memref.load %arg1[%c1] : memref<8xf32, #tpu.memory_space<smem>>
    %c2 = arith.constant 2 : index
    %2 = memref.load %arg1[%c2] : memref<8xf32, #tpu.memory_space<smem>>
    %c3 = arith.constant 3 : index
    %3 = memref.load %arg1[%c3] : memref<8xf32, #tpu.memory_space<smem>>
    %c4 = arith.constant 4 : index
    %4 = memref.load %arg1[%c4] : memref<8xf32, #tpu.memory_space<smem>>
    %c5 = arith.constant 5 : index
    %5 = memref.load %arg1[%c5] : memref<8xf32, #tpu.memory_space<smem>>
    %c0_0 = arith.constant 0 : index
    %c0_1 = arith.constant 0 : index
    %6 = vector.load %arg2[%c0_0, %c0_1] : memref<8x1xf32, #tpu.memory_space<vmem>>, vector<8x1xf32>
    %c0_2 = arith.constant 0 : index
    %c0_3 = arith.constant 0 : index
    %7 = vector.load %arg3[%c0_2, %c0_3] : memref<8x1xf32, #tpu.memory_space<vmem>>, vector<8x1xf32>
    %8 = vector.broadcast %0 : f32 to vector<8x1xf32>
    %9 = arith.cmpf oge, %6, %8 : vector<8x1xf32>
    %10 = vector.broadcast %1 : f32 to vector<8x1xf32>
    %11 = arith.cmpf ole, %6, %10 : vector<8x1xf32>
    %12 = arith.andi %9, %11 : vector<8x1xi1>
    %13 = vector.broadcast %2 : f32 to vector<8x1xf32>
    %14 = arith.cmpf oge, %7, %13 : vector<8x1xf32>
    %15 = arith.andi %12, %14 : vector<8x1xi1>
    %16 = vector.broadcast %3 : f32 to vector<8x1xf32>
    %17 = arith.cmpf ole, %7, %16 : vector<8x1xf32>
    %18 = arith.andi %15, %17 : vector<8x1xi1>
    %19 = arith.extui %18 : vector<8x1xi1> to vector<8x1xi32>
    %20 = arith.sitofp %19 : vector<8x1xi32> to vector<8x1xf32>
    %cst = arith.constant 1.000000e+00 : f32
    %21 = vector.broadcast %cst : f32 to vector<8x1xf32>
    %22 = arith.subf %21, %20 : vector<8x1xf32>
    %c0_4 = arith.constant 0 : index
    %c0_5 = arith.constant 0 : index
    %23 = vector.load %arg4[%c0_4, %c0_5] : memref<8x16xf32, #tpu.memory_space<vmem>>, vector<8x16xf32>
    %c0_6 = arith.constant 0 : index
    %c0_7 = arith.constant 0 : index
    %24 = vector.load %arg5[%c0_6, %c0_7] : memref<16x32xf32, #tpu.memory_space<vmem>>, vector<16x32xf32>
    %cst_8 = arith.constant dense<0.000000e+00> : vector<8x32xf32>
    %25 = tpu.matmul %23, %24, %cst_8 {dimension_numbers = #tpu.dot_dimension_numbers<[1], [0], [0], [1], [0, 0, 1, 1], [], []>} : vector<8x16xf32>, vector<16x32xf32>, vector<8x32xf32> -> vector<8x32xf32>
    %c0_9 = arith.constant 0 : index
    %c0_10 = arith.constant 0 : index
    %26 = vector.load %arg6[%c0_9, %c0_10] : memref<1x32xf32, #tpu.memory_space<vmem>>, vector<1x32xf32>
    %27 = vector.broadcast %26 : vector<1x32xf32> to vector<8x32xf32>
    %28 = arith.addf %25, %27 : vector<8x32xf32>
    %cst_11 = arith.constant 0.000000e+00 : f32
    %29 = vector.broadcast %cst_11 : f32 to vector<8x32xf32>
    %30 = arith.maximumf %28, %29 : vector<8x32xf32>
    %c0_12 = arith.constant 0 : index
    %c0_13 = arith.constant 0 : index
    %31 = vector.load %arg7[%c0_12, %c0_13] : memref<1x32xf32, #tpu.memory_space<vmem>>, vector<1x32xf32>
    %32 = vector.broadcast %31 : vector<1x32xf32> to vector<8x32xf32>
    %33 = arith.mulf %30, %32 : vector<8x32xf32>
    %cst_14 = arith.constant dense<0.000000e+00> : vector<8xf32>
    %34 = vector.multi_reduction <add>, %33, %cst_14 [1] : vector<8x32xf32> to vector<8xf32>
    %35 = vector.shape_cast %34 : vector<8xf32> to vector<8x1xf32>
    %36 = vector.broadcast %4 : f32 to vector<8x1xf32>
    %37 = arith.mulf %22, %36 : vector<8x1xf32>
    %38 = arith.addf %35, %37 : vector<8x1xf32>
    %39 = vector.broadcast %5 : f32 to vector<8x1xf32>
    %40 = arith.addf %38, %39 : vector<8x1xf32>
    %41 = arith.negf %40 : vector<8x1xf32>
    %42 = math.exp %41 : vector<8x1xf32>
    %cst_15 = arith.constant 1.000000e+00 : f32
    %43 = vector.broadcast %cst_15 : f32 to vector<8x1xf32>
    %44 = arith.addf %43, %42 : vector<8x1xf32>
    %45 = arith.divf %43, %44 : vector<8x1xf32>
    %c0_16 = arith.constant 0 : index
    %c0_17 = arith.constant 0 : index
    %46 = vector.load %arg8[%c0_16, %c0_17] : memref<8x1xf32, #tpu.memory_space<vmem>>, vector<8x1xf32>
    tpu.vector_store %arg8[%c0_16, %c0_17], %45 {strides = array<i32>} : memref<8x1xf32, #tpu.memory_space<vmem>>, vector<8x1xf32>,
    return
  }
  func.func @transform_0(%arg0: i32, %arg1: memref<8xf32, #tpu.memory_space<smem>>) -> (i32, i32) {
    %c0_i32 = arith.constant 0 : i32
    %c0_i32_0 = arith.constant 0 : i32
    return %arg0, %c0_i32 : i32, i32
  }
  func.func @transform_1(%arg0: i32, %arg1: memref<8xf32, #tpu.memory_space<smem>>) -> (i32, i32) {
    %c0_i32 = arith.constant 0 : i32
    %c0_i32_0 = arith.constant 0 : i32
    return %arg0, %c0_i32 : i32, i32
  }
  func.func @transform_2(%arg0: i32, %arg1: memref<8xf32, #tpu.memory_space<smem>>) -> (i32, i32) {
    %c0_i32 = arith.constant 0 : i32
    %c0_i32_0 = arith.constant 0 : i32
    return %arg0, %c0_i32 : i32, i32
  }
  func.func @transform_3(%arg0: i32, %arg1: memref<8xf32, #tpu.memory_space<smem>>) -> (i32, i32) {
    %c0_i32 = arith.constant 0 : i32
    %c0_i32_0 = arith.constant 0 : i32
    %c0_i32_1 = arith.constant 0 : i32
    return %c0_i32, %c0_i32_0 : i32, i32
  }
  func.func @transform_4(%arg0: i32, %arg1: memref<8xf32, #tpu.memory_space<smem>>) -> (i32, i32) {
    %c0_i32 = arith.constant 0 : i32
    %c0_i32_0 = arith.constant 0 : i32
    %c0_i32_1 = arith.constant 0 : i32
    return %c0_i32, %c0_i32_0 : i32, i32
  }
  func.func @transform_5(%arg0: i32, %arg1: memref<8xf32, #tpu.memory_space<smem>>) -> (i32, i32) {
    %c0_i32 = arith.constant 0 : i32
    %c0_i32_0 = arith.constant 0 : i32
    %c0_i32_1 = arith.constant 0 : i32
    return %c0_i32, %c0_i32_0 : i32, i32
  }
  func.func @transform_6(%arg0: i32, %arg1: memref<8xf32, #tpu.memory_space<smem>>) -> (i32, i32) {
    %c0_i32 = arith.constant 0 : i32
    %c0_i32_0 = arith.constant 0 : i32
    return %arg0, %c0_i32 : i32, i32
  }
}

</mosaic_0001>

<llo_original>
// kernel: tpu_custom_call.1
$region0: #{tpu_custom_call.1}
  #allocation0 [shape = 'u32[]', space=smem, size = 0x4, offset = 0x4, fixed_abs, tag = 'smem constant byte address 0x4 - core index']
  #allocation1 [shape = 'u32[144,128]{1,0:T(1,128)}', space=vmem, size = 0x12000, scoped, tag = 'internal scratch']
  #allocation2 [shape = 's32[1]{0}', space=sflag, size = 0x4, scoped, tag = 'scoped memory for tpu_custom_call.1']
  #allocation3 [shape = 'u8[512]{0}', space=smem, size = 0x200, scoped, tag = 'prefetched SMEM operand 0']
  %s0 = inlined_call_operand.vmem [shape: f32[8], index: 0, kind: input, shape index: {}]
  %s1 = inlined_call_operand.vmem [shape: f32[8,1], index: 1, kind: input, shape index: {}]
  %s2 = inlined_call_operand.vmem [shape: f32[8,1], index: 2, kind: input, shape index: {}]
  %s3 = inlined_call_operand.vmem [shape: f32[8,16], index: 3, kind: input, shape index: {}]
  %s4 = inlined_call_operand.vmem [shape: f32[16,32], index: 4, kind: input, shape index: {}]
  %s5 = inlined_call_operand.vmem [shape: f32[1,32], index: 5, kind: input, shape index: {}]
  %s6 = inlined_call_operand.vmem [shape: f32[1,32], index: 6, kind: input, shape index: {}]
  %s7 = inlined_call_operand.vmem [shape: f32[8,1], index: 7, kind: output, shape index: {}]
  %s8 = sld [smem:[#allocation0]]
  $region34: #{tpu_custom_call.1} parent=0
    _
  %s10 = ssub.s32 1, %s8
  %s11 = scalar_select 0, %s10, %s8
  %s12 = sshll.u32 %s0, 4
  %s13 = int_to_ptr.vmem [resolvable:$true] %s12
  %15 = dma.vmem_to_smem %s13, 16, [#allocation3], [#allocation2]
  %16 = dma.done [#allocation2], 16
  %17 = sfence
  // Predicated region
  $region2: #{tpu_custom_call.1} parent=0 // pred_check
    _
  $region3: #{tpu_custom_call.1} parent=0 // pred_check_branch
    %19 = sbr.rel (0) target = $region5
  $region4: #{tpu_custom_call.1} parent=0 // pred_region
    _
  $region5: #{tpu_custom_call.1} parent=0 // pred_fallthru
    _
  // Predicated region
  $region6: #{tpu_custom_call.1} parent=0 // pred_check
    _
  $region7: #{tpu_custom_call.1} parent=0 // pred_check_branch
    %21 = sbr.rel (0) target = $region9
  $region8: #{tpu_custom_call.1} parent=0 // pred_region
    _
  $region9: #{tpu_custom_call.1} parent=0 // pred_fallthru
    _
  // Predicated region
  $region10: #{tpu_custom_call.1} parent=0 // pred_check
    _
  $region11: #{tpu_custom_call.1} parent=0 // pred_check_branch
    %23 = sbr.rel (0) target = $region13
  $region12: #{tpu_custom_call.1} parent=0 // pred_region
    _
  $region13: #{tpu_custom_call.1} parent=0 // pred_fallthru
    _
  // Predicated region
  $region14: #{tpu_custom_call.1} parent=0 // pred_check
    _
  $region15: #{tpu_custom_call.1} parent=0 // pred_check_branch
    %25 = sbr.rel (0) target = $region17
  $region16: #{tpu_custom_call.1} parent=0 // pred_region
    _
  $region17: #{tpu_custom_call.1} parent=0 // pred_fallthru
    _
  // Predicated region
  $region18: #{tpu_custom_call.1} parent=0 // pred_check
    _
  $region19: #{tpu_custom_call.1} parent=0 // pred_check_branch
    %27 = sbr.rel (0) target = $region21
  $region20: #{tpu_custom_call.1} parent=0 // pred_region
    _
  $region21: #{tpu_custom_call.1} parent=0 // pred_fallthru
    _
  // Predicated region
  $region22: #{tpu_custom_call.1} parent=0 // pred_check
    _
  $region23: #{tpu_custom_call.1} parent=0 // pred_check_branch
    %29 = sbr.rel (0) target = $region25
  $region24: #{tpu_custom_call.1} parent=0 // pred_region
    _
  $region25: #{tpu_custom_call.1} parent=0 // pred_fallthru
    _
  %s30 = sld [smem:[#allocation3]]
  %s31 = sld [smem:[#allocation3 + $0x1]]
  %s32 = sld [smem:[#allocation3 + $0x2]]
  %s33 = sld [smem:[#allocation3 + $0x3]]
  %s34 = sld [smem:[#allocation3 + $0x4]]
  %s35 = sld [smem:[#allocation3 + $0x5]]
  %v36 = vld [vmem:[%s1] sm:$0xff]
  %v37 = vld [vmem:[%s2] sm:$0xff]
  %v38 = vstv %s30
  %vm39 = vcmp.ge.f32.partialorder %v36, %v38
  %v40 = vstv %s31
  %vm41 = vcmp.le.f32.partialorder %v36, %v40
  %vm42 = vmand %vm39, %vm41
  %v43 = vstv %s32
  %vm44 = vcmp.ge.f32.partialorder %v37, %v43
  %vm45 = vmand %vm42, %vm44
  %v46 = vstv %s33
  %vm47 = vcmp.le.f32.partialorder %v37, %v46
  %vm48 = vmand %vm45, %vm47
  %v49 = vsel %vm48, 1, 0
  %v50 = vcvt.s32.f32 %v49
  %v51 = vsub.f32 1.0, %v50
  %v52 = vld [vmem:[%s3] sm:$0xff]
  %v53 = vld [vmem:[%s4] sm:$0xff]
  %v54 = vld [vmem:[%s4 + $0x8] sm:$0xff]
  %v55 = vld [vmem:[%s5] sm:$0x1]
  %v57 = vlaneseq
  %v58 = vshrl.u32 %v57, 7
  %v59 = vsub.s32 0, %v58
  %v60 = vrot.slane %v55, %v59
  %vm62 = vcmask 130048
  %v64 = vsel %vm62, %v52, 0
  %66 = vmatprep.subr.mxu0 0.0
  %67 = vmatpush1.msra.mxu0 %v53
  %68 = vmatprep.subr.mxu0 0.0
  %69 = vmatpush1.msra.mxu0 %v54
  %70 = vmatprep.subr.mxu0 0.0
  %71 = vmatpush1.msra.mxu0 0.0
  %72 = vmatprep.subr.mxu0 0.0
  %73 = vmatpush1.msra.mxu0 0.0
  %74 = vmatprep.subr.mxu0 0.0
  %75 = vmatpush1.msra.mxu0 0.0
  %76 = vmatprep.subr.mxu0 0.0
  %77 = vmatpush1.msra.mxu0 0.0
  %78 = vmatprep.subr.mxu0 0.0
  %79 = vmatpush1.msra.mxu0 0.0
  %80 = vmatprep.subr.mxu0 0.0
  %81 = vmatpush1.msra.mxu0 0.0
  %82 = vmatprep.subr.mxu0 0.0
  %83 = vmatpush1.msra.mxu0 0.0
  %84 = vmatprep.subr.mxu0 0.0
  %85 = vmatpush1.msra.mxu0 0.0
  %86 = vmatprep.subr.mxu0 0.0
  %87 = vmatpush1.msra.mxu0 0.0
  %88 = vmatprep.subr.mxu0 0.0
  %89 = vmatpush1.msra.mxu0 0.0
  %90 = vmatprep.subr.mxu0 0.0
  %91 = vmatpush1.msra.mxu0 0.0
  %92 = vmatprep.subr.mxu0 0.0
  %93 = vmatpush1.msra.mxu0 0.0
  %94 = vmatprep.subr.mxu0 0.0
  %95 = vmatpush1.msra.mxu0 0.0
  %96 = vmatprep.subr.mxu0 0.0
  %97 = vmatpush1.msra.mxu0 0.0
  %98 = vmatprep.subr.mxu0 0.0
  %99 = vmatpush1.msra.mxu0 0.0
  %100 = vmatprep.subr.mxu0 0.0
  %101 = vmatpush1.msra.mxu0 0.0
  %102 = vmatprep.subr.mxu0 0.0
  %103 = vmatpush1.msra.mxu0 0.0
  %104 = vmatprep.subr.mxu0 0.0
  %105 = vmatpush1.msra.mxu0 0.0
  %106 = vmatprep.subr.mxu0 0.0
  %107 = vmatpush1.msra.mxu0 0.0
  %108 = vmatprep.subr.mxu0 0.0
  %109 = vmatpush1.msra.mxu0 0.0
  %110 = vmatprep.subr.mxu0 0.0
  %111 = vmatpush1.msra.mxu0 0.0
  %112 = vmatprep.subr.mxu0 0.0
  %113 = vmatpush1.msra.mxu0 0.0
  %114 = vmatprep.subr.mxu0 0.0
  %115 = vmatpush1.msra.mxu0 0.0
  %116 = vmatprep.subr.mxu0 0.0
  %117 = vmatpush1.msra.mxu0 0.0
  %118 = vmatprep.subr.mxu0 0.0
  %119 = vmatpush1.msra.mxu0 0.0
  %120 = vmatprep.subr.mxu0 0.0
  %121 = vmatpush1.msra.mxu0 0.0
  %122 = vmatprep.subr.mxu0 0.0
  %123 = vmatpush1.msra.mxu0 0.0
  %124 = vmatprep.subr.mxu0 0.0
  %125 = vmatpush1.msra.mxu0 0.0
  %126 = vmatprep.subr.mxu0 0.0
  %127 = vmatpush1.msra.mxu0 0.0
  %128 = vmatprep.subr.mxu0 0.0
  %129 = vmatpush1.msra.mxu0 0.0
  %130 = vmatprep.mubr.f32.mxu0 0.0
  %131 = vmatmul.mubr.f32.gmra.mrb[0].mxu0 %v64
  %v132 = vpop.f32.mrb[0].mxu0
  %v133 = vadd.f32 %v60, %v132
  %v134 = vpop.f32.mrb[0].mxu0
  %135 = vdwg.mxu0
  %v136 = vmax.f32 %v133, 0.0
  %v137 = vld [vmem:[%s6] sm:$0x1]
  %v139 = vlaneseq
  %v140 = vshrl.u32 %v139, 7
  %v141 = vsub.s32 0, %v140
  %v142 = vrot.slane %v137, %v141
  %v144 = vmul.f32 %v136, %v142
  %vm145 = vcmask 261120
  %v146 = vsel %vm145, %v144, 0.0
  %147 = vadd.xlane.f32.xlu0 %v146
  %v148 = vpop.xlane.xlu0 %147
  %v149 = vstv %s34
  %v150 = vmul.f32 %v51, %v149
  %v151 = vadd.f32 %v148, %v150
  %v152 = vstv %s35
  %v153 = vadd.f32 %v151, %v152
  %v154 = vxor.u32 %v153, 2147483648
  %v155 = vmul.f32 %v154, 1.442695
  %v156 = vpow.pop %v155
  %v157 = vadd.f32 %v156, 1.0
  %v158 = vrcp.pop %v157
  %v159 = vmul.f32 1.0, %v158
  %vm160 = vcmask 7168
  %161 = vst.msk [vmem:[%s7] sm:$0xff] %vm160, %v159
  // Predicated region
  $region26: #{tpu_custom_call.1} parent=0 // pred_check
    _
  $region27: #{tpu_custom_call.1} parent=0 // pred_check_branch
    %163 = sbr.rel (0) target = $region29
  $region28: #{tpu_custom_call.1} parent=0 // pred_region
    _
  $region29: #{tpu_custom_call.1} parent=0 // pred_fallthru
    _
  // Predicated region
  $region30: #{tpu_custom_call.1} parent=0 // pred_check
    _
  $region31: #{tpu_custom_call.1} parent=0 // pred_check_branch
    %165 = sbr.rel (0) target = $region33
  $region32: #{tpu_custom_call.1} parent=0 // pred_region
    _
  $region33: #{tpu_custom_call.1} parent=0 // pred_fallthru
    _

</llo_original>
